<compile_context>
chip_gen: v7x
topology: tpu7x:2x2x1
jax: 0.10.0
libtpu: 0.0.40
codegen_flags: <defaults>
</compile_context>

<pallas_src>
from functools import partial

import jax
import jax.numpy as jnp
from jax.experimental import pallas as pl
from jax.experimental.pallas import tpu as pltpu  # noqa: F401  (TPU backend)

HIDDEN = 64
LANE = 128          # packed slab lane width (a_src col = 64, a_dst col = 65)
NEG_SLOPE = 0.2
MASK_BIAS = -1e30


# ---------------------------------------------------------------------------
# Fused Pallas kernel: 3x GAT + global mean pool + Linear
# ---------------------------------------------------------------------------
def _gcn_fused_kernel(x_ref, adjb_ref, w_ref, b_ref, out_ref):
    # adjb: (N, N) additive mask, 0 where edge j->i (incl. self loops), -1e30 else
    adj_bias = adjb_ref[...]                       # (N, N)
    bias = b_ref[...]                              # (4, 128)
    h = x_ref[...]                                 # (N, 64), layer-1 feats 0-padded

    for l in range(3):                             # unrolled at trace time
        # One fused MXU matmul per layer: [W | W@att_src | W@att_dst | zeros].
        h_aug = jnp.dot(h, w_ref[l], preferred_element_type=jnp.float32)  # (N, 128)
        hw = h_aug[:, :HIDDEN]                     # (N, 64)  = h_in @ W
        a_src = h_aug[:, HIDDEN:HIDDEN + 1]        # (N, 1)   = <h, att_src>
        a_dst = h_aug[:, HIDDEN + 1:HIDDEN + 2]    # (N, 1)   = <h, att_dst>

        # e[i, j] = leaky_relu(a_dst[i] + a_src[j]) + additive edge mask
        e = a_dst + jnp.transpose(a_src)                                   # (N, N)
        e = jnp.where(e >= 0.0, e, NEG_SLOPE * e) + adj_bias

        # masked row softmax over sources j (exact parity would use approx=False;
        # the reciprocal is off the critical path either way at this size)
        m = jnp.max(e, axis=-1, keepdims=True)
        p = jnp.exp(e - m)
        s = jnp.sum(p, axis=-1, keepdims=True)
        attn = p * pl.reciprocal(s, approx=True)

        h = (jnp.dot(attn, hw, preferred_element_type=jnp.float32)
             + bias[l:l + 1, :HIDDEN])                                     # (N, 64)
        if l < 2:
            h = jnp.maximum(h, 0.0)                # relu after conv1 / conv2

    # global mean pool (batch=None -> single graph), dropout identity at eval,
    # final Linear with weight padded to 128 lanes -> lane-dense (1, 128) store.
    pooled = jnp.mean(h, axis=0, keepdims=True)                            # (1, 64)
    out_ref[...] = (
        jnp.dot(pooled, w_ref[3], preferred_element_type=jnp.float32)
        + bias[3:4, :]
    )


# ---------------------------------------------------------------------------
# Parameter init (deterministic, glorot-uniform-style; synthetic weights)
# ---------------------------------------------------------------------------
def _glorot(key, shape):
    fan_in, fan_out = shape[0], shape[-1]
    limit = jnp.sqrt(6.0 / (fan_in + fan_out))
    return jax.random.uniform(key, shape, jnp.float32, -limit, limit)


def init_params(key, in_channels, out_channels):
    params = {}
    dims = [(in_channels, HIDDEN), (HIDDEN, HIDDEN), (HIDDEN, HIDDEN)]
    for li, (fi, fo) in enumerate(dims, start=1):
        key, k1, k2, k3 = jax.random.split(key, 4)
        params[f"conv{li}"] = {
            "w": _glorot(k1, (fi, fo)),
            "att_src": _glorot(k2, (fo, 1)),
            "att_dst": _glorot(k3, (fo, 1)),
            "bias": jnp.zeros((1, fo), jnp.float32),
        }
    key, kw, kb = jax.random.split(key, 3)
    params["lin"] = {
        "w": _glorot(kw, (HIDDEN, out_channels)),
        "b": jax.random.uniform(
            kb, (1, out_channels), jnp.float32,
            -1.0 / jnp.sqrt(HIDDEN), 1.0 / jnp.sqrt(HIDDEN)),
    }
    return params


# ---------------------------------------------------------------------------
# One-time packing: fold attention vectors into weights, pack into 2 slabs
# ---------------------------------------------------------------------------
def pack_params(params, in_channels, out_channels):
    w_slab = jnp.zeros((4, HIDDEN, LANE), jnp.float32)
    b_slab = jnp.zeros((4, LANE), jnp.float32)
    fins = [in_channels, HIDDEN, HIDDEN]
    for l, name in enumerate(("conv1", "conv2", "conv3")):
        c = params[name]
        w = c["w"]                                   # (fin, 64)
        fin = fins[l]
        w_slab = w_slab.at[l, :fin, :HIDDEN].set(w)
        w_slab = w_slab.at[l, :fin, HIDDEN].set(jnp.dot(w, c["att_src"])[:, 0])
        w_slab = w_slab.at[l, :fin, HIDDEN + 1].set(jnp.dot(w, c["att_dst"])[:, 0])
        b_slab = b_slab.at[l, :HIDDEN].set(c["bias"][0])
    w_slab = w_slab.at[3, :HIDDEN, :out_channels].set(params["lin"]["w"])
    b_slab = b_slab.at[3, :out_channels].set(params["lin"]["b"][0])
    return w_slab, b_slab


# ---------------------------------------------------------------------------
# Per-graph (one-time) adjacency mask
# ---------------------------------------------------------------------------
def build_adj_bias(edge_index, num_nodes):
    # dense adjacency: A[i, j] = 1 if edge j -> i, plus self loops.
    # TODO(synk): scatter-set deduplicates repeated (src,dst) edges; PyG's
    # edge-wise softmax would count duplicates, so multigraphs differ.
    adj = jnp.zeros((num_nodes, num_nodes), jnp.float32)
    adj = adj.at[edge_index[1], edge_index[0]].set(1.0)
    adj = jnp.maximum(adj, jnp.eye(num_nodes, dtype=jnp.float32))
    return jnp.where(adj > 0.0, 0.0, MASK_BIAS).astype(jnp.float32)


# ---------------------------------------------------------------------------
# Full forward (inference; batch=None -> single graph), one pallas_call, JIT'ed
# ---------------------------------------------------------------------------
@partial(jax.jit, static_argnums=(4,))
def gcn_forward(w_slab, b_slab, x, adj_bias, out_channels):
    n, in_c = x.shape
    x_pad = jnp.pad(x, ((0, 0), (0, HIDDEN - in_c))) if in_c < HIDDEN else x

    # Single fused, gridless call: whole arrays live in VMEM (~150 KB total),
    # intermediates never leave the chip, only one (1, 128) row hits HBM.
    # TODO(synk): for multi-graph batches add a leading grid=(B,) axis with
    # dimension_semantics=("parallel",) to use v7x's second TensorCore.
    out128 = pl.pallas_call(
        _gcn_fused_kernel,
        out_shape=jax.ShapeDtypeStruct((1, LANE), jnp.float32),
    )(x_pad, adj_bias, w_slab, b_slab)
    return out128[:, :out_channels]


if __name__ == "__main__":
    key = jax.random.PRNGKey(0)

    num_nodes = 16
    in_channels = 4
    out_channels = 7

    kx, kp = jax.random.split(key)
    x = jax.random.normal(kx, (num_nodes, in_channels), jnp.float32)

    # deterministic bidirectional ring graph: edge_index shape (2, 32)
    src = jnp.arange(num_nodes, dtype=jnp.int32)
    dst = (src + 1) % num_nodes
    edge_index = jnp.concatenate(
        [jnp.stack([src, dst]), jnp.stack([dst, src])], axis=1)

    params = init_params(kp, in_channels, out_channels)

    # hoisted, one-time preprocessing (per review): fold + pack weights, build mask
    w_slab, b_slab = pack_params(params, in_channels, out_channels)
    adj_bias = build_adj_bias(edge_index, num_nodes)

    out = gcn_forward(w_slab, b_slab, x, adj_bias, out_channels)
    jax.block_until_ready(out)
    assert out.shape == (1, out_channels)
    print("KERNEL_OK")
</pallas_src>

<mosaic_0001>
module attributes {stable_mosaic.version = 11 : i64} {
  func.func @_gcn_fused_kernel(%arg0: memref<16x64xf32, #tpu.memory_space<vmem>>, %arg1: memref<16x16xf32, #tpu.memory_space<vmem>>, %arg2: memref<4x64x128xf32, #tpu.memory_space<vmem>>, %arg3: memref<4x128xf32, #tpu.memory_space<vmem>>, %arg4: memref<1x128xf32, #tpu.memory_space<vmem>>) attributes {dimension_semantics = [], scalar_prefetch = 0 : i64, scratch_operands = 0 : i64, tpu.core_type = #tpu.core_type<tc>} {
    %c0 = arith.constant 0 : index
    %c0_0 = arith.constant 0 : index
    %0 = vector.load %arg1[%c0, %c0_0] : memref<16x16xf32, #tpu.memory_space<vmem>>, vector<16x16xf32>
    %c0_1 = arith.constant 0 : index
    %c0_2 = arith.constant 0 : index
    %1 = vector.load %arg3[%c0_1, %c0_2] : memref<4x128xf32, #tpu.memory_space<vmem>>, vector<4x128xf32>
    %c0_3 = arith.constant 0 : index
    %c0_4 = arith.constant 0 : index
    %2 = vector.load %arg0[%c0_3, %c0_4] : memref<16x64xf32, #tpu.memory_space<vmem>>, vector<16x64xf32>
    %c0_5 = arith.constant 0 : index
    %c0_6 = arith.constant 0 : index
    %c0_7 = arith.constant 0 : index
    %3 = vector.load %arg2[%c0_5, %c0_6, %c0_7] : memref<4x64x128xf32, #tpu.memory_space<vmem>>, vector<1x64x128xf32>
    %4 = vector.shape_cast %3 : vector<1x64x128xf32> to vector<64x128xf32>
    %cst = arith.constant dense<0.000000e+00> : vector<16x128xf32>
    %5 = tpu.matmul %2, %4, %cst {dimension_numbers = #tpu.dot_dimension_numbers<[1], [0], [0], [1], [0, 0, 1, 1], [], []>} : vector<16x64xf32>, vector<64x128xf32>, vector<16x128xf32> -> vector<16x128xf32>
    %6 = vector.extract_strided_slice %5 {offsets = [0, 0], sizes = [16, 64], strides = [1, 1]} : vector<16x128xf32> to vector<16x64xf32>
    %7 = vector.extract_strided_slice %5 {offsets = [0, 64], sizes = [16, 1], strides = [1, 1]} : vector<16x128xf32> to vector<16x1xf32>
    %8 = vector.extract_strided_slice %5 {offsets = [0, 65], sizes = [16, 1], strides = [1, 1]} : vector<16x128xf32> to vector<16x1xf32>
    %9 = tpu.transpose %7, [1, 0] : vector<16x1xf32> -> vector<1x16xf32>
    %10 = vector.broadcast %8 : vector<16x1xf32> to vector<16x16xf32>
    %11 = vector.broadcast %9 : vector<1x16xf32> to vector<16x16xf32>
    %12 = arith.addf %10, %11 : vector<16x16xf32>
    %cst_8 = arith.constant 0.000000e+00 : f32
    %13 = vector.broadcast %cst_8 : f32 to vector<16x16xf32>
    %14 = arith.cmpf oge, %12, %13 : vector<16x16xf32>
    %cst_9 = arith.constant 2.000000e-01 : f32
    %15 = vector.broadcast %cst_9 : f32 to vector<16x16xf32>
    %16 = arith.mulf %15, %12 : vector<16x16xf32>
    %17 = arith.select %14, %12, %16 : vector<16x16xi1>, vector<16x16xf32>
    %18 = arith.addf %17, %0 : vector<16x16xf32>
    %cst_10 = arith.constant dense<0xFF800000> : vector<16xf32>
    %19 = vector.multi_reduction <maximumf>, %18, %cst_10 [1] : vector<16x16xf32> to vector<16xf32>
    %20 = vector.shape_cast %19 : vector<16xf32> to vector<16x1xf32>
    %21 = vector.broadcast %20 : vector<16x1xf32> to vector<16x16xf32>
    %22 = arith.subf %18, %21 : vector<16x16xf32>
    %23 = math.exp %22 : vector<16x16xf32>
    %cst_11 = arith.constant dense<0.000000e+00> : vector<16xf32>
    %24 = vector.multi_reduction <add>, %23, %cst_11 [1] : vector<16x16xf32> to vector<16xf32>
    %25 = vector.shape_cast %24 : vector<16xf32> to vector<16x1xf32>
    %26 = tpu.reciprocal %25 {approx = true} : vector<16x1xf32> -> vector<16x1xf32>
    %27 = vector.broadcast %26 : vector<16x1xf32> to vector<16x16xf32>
    %28 = arith.mulf %23, %27 : vector<16x16xf32>
    %cst_12 = arith.constant dense<0.000000e+00> : vector<16x64xf32>
    %29 = tpu.matmul %28, %6, %cst_12 {dimension_numbers = #tpu.dot_dimension_numbers<[1], [0], [0], [1], [0, 0, 1, 1], [], []>} : vector<16x16xf32>, vector<16x64xf32>, vector<16x64xf32> -> vector<16x64xf32>
    %30 = vector.extract_strided_slice %1 {offsets = [0, 0], sizes = [1, 64], strides = [1, 1]} : vector<4x128xf32> to vector<1x64xf32>
    %31 = vector.broadcast %30 : vector<1x64xf32> to vector<16x64xf32>
    %32 = arith.addf %29, %31 : vector<16x64xf32>
    %cst_13 = arith.constant 0.000000e+00 : f32
    %33 = vector.broadcast %cst_13 : f32 to vector<16x64xf32>
    %34 = arith.maximumf %32, %33 : vector<16x64xf32>
    %c1 = arith.constant 1 : index
    %c0_14 = arith.constant 0 : index
    %c0_15 = arith.constant 0 : index
    %35 = vector.load %arg2[%c1, %c0_14, %c0_15] : memref<4x64x128xf32, #tpu.memory_space<vmem>>, vector<1x64x128xf32>
    %36 = vector.shape_cast %35 : vector<1x64x128xf32> to vector<64x128xf32>
    %cst_16 = arith.constant dense<0.000000e+00> : vector<16x128xf32>
    %37 = tpu.matmul %34, %36, %cst_16 {dimension_numbers = #tpu.dot_dimension_numbers<[1], [0], [0], [1], [0, 0, 1, 1], [], []>} : vector<16x64xf32>, vector<64x128xf32>, vector<16x128xf32> -> vector<16x128xf32>
    %38 = vector.extract_strided_slice %37 {offsets = [0, 0], sizes = [16, 64], strides = [1, 1]} : vector<16x128xf32> to vector<16x64xf32>
    %39 = vector.extract_strided_slice %37 {offsets = [0, 64], sizes = [16, 1], strides = [1, 1]} : vector<16x128xf32> to vector<16x1xf32>
    %40 = vector.extract_strided_slice %37 {offsets = [0, 65], sizes = [16, 1], strides = [1, 1]} : vector<16x128xf32> to vector<16x1xf32>
    %41 = tpu.transpose %39, [1, 0] : vector<16x1xf32> -> vector<1x16xf32>
    %42 = vector.broadcast %40 : vector<16x1xf32> to vector<16x16xf32>
    %43 = vector.broadcast %41 : vector<1x16xf32> to vector<16x16xf32>
    %44 = arith.addf %42, %43 : vector<16x16xf32>
    %cst_17 = arith.constant 0.000000e+00 : f32
    %45 = vector.broadcast %cst_17 : f32 to vector<16x16xf32>
    %46 = arith.cmpf oge, %44, %45 : vector<16x16xf32>
    %cst_18 = arith.constant 2.000000e-01 : f32
    %47 = vector.broadcast %cst_18 : f32 to vector<16x16xf32>
    %48 = arith.mulf %47, %44 : vector<16x16xf32>
    %49 = arith.select %46, %44, %48 : vector<16x16xi1>, vector<16x16xf32>
    %50 = arith.addf %49, %0 : vector<16x16xf32>
    %cst_19 = arith.constant dense<0xFF800000> : vector<16xf32>
    %51 = vector.multi_reduction <maximumf>, %50, %cst_19 [1] : vector<16x16xf32> to vector<16xf32>
    %52 = vector.shape_cast %51 : vector<16xf32> to vector<16x1xf32>
    %53 = vector.broadcast %52 : vector<16x1xf32> to vector<16x16xf32>
    %54 = arith.subf %50, %53 : vector<16x16xf32>
    %55 = math.exp %54 : vector<16x16xf32>
    %cst_20 = arith.constant dense<0.000000e+00> : vector<16xf32>
    %56 = vector.multi_reduction <add>, %55, %cst_20 [1] : vector<16x16xf32> to vector<16xf32>
    %57 = vector.shape_cast %56 : vector<16xf32> to vector<16x1xf32>
    %58 = tpu.reciprocal %57 {approx = true} : vector<16x1xf32> -> vector<16x1xf32>
    %59 = vector.broadcast %58 : vector<16x1xf32> to vector<16x16xf32>
    %60 = arith.mulf %55, %59 : vector<16x16xf32>
    %cst_21 = arith.constant dense<0.000000e+00> : vector<16x64xf32>
    %61 = tpu.matmul %60, %38, %cst_21 {dimension_numbers = #tpu.dot_dimension_numbers<[1], [0], [0], [1], [0, 0, 1, 1], [], []>} : vector<16x16xf32>, vector<16x64xf32>, vector<16x64xf32> -> vector<16x64xf32>
    %62 = vector.extract_strided_slice %1 {offsets = [1, 0], sizes = [1, 64], strides = [1, 1]} : vector<4x128xf32> to vector<1x64xf32>
    %63 = vector.broadcast %62 : vector<1x64xf32> to vector<16x64xf32>
    %64 = arith.addf %61, %63 : vector<16x64xf32>
    %cst_22 = arith.constant 0.000000e+00 : f32
    %65 = vector.broadcast %cst_22 : f32 to vector<16x64xf32>
    %66 = arith.maximumf %64, %65 : vector<16x64xf32>
    %c2 = arith.constant 2 : index
    %c0_23 = arith.constant 0 : index
    %c0_24 = arith.constant 0 : index
    %67 = vector.load %arg2[%c2, %c0_23, %c0_24] : memref<4x64x128xf32, #tpu.memory_space<vmem>>, vector<1x64x128xf32>
    %68 = vector.shape_cast %67 : vector<1x64x128xf32> to vector<64x128xf32>
    %cst_25 = arith.constant dense<0.000000e+00> : vector<16x128xf32>
    %69 = tpu.matmul %66, %68, %cst_25 {dimension_numbers = #tpu.dot_dimension_numbers<[1], [0], [0], [1], [0, 0, 1, 1], [], []>} : vector<16x64xf32>, vector<64x128xf32>, vector<16x128xf32> -> vector<16x128xf32>
    %70 = vector.extract_strided_slice %69 {offsets = [0, 0], sizes = [16, 64], strides = [1, 1]} : vector<16x128xf32> to vector<16x64xf32>
    %71 = vector.extract_strided_slice %69 {offsets = [0, 64], sizes = [16, 1], strides = [1, 1]} : vector<16x128xf32> to vector<16x1xf32>
    %72 = vector.extract_strided_slice %69 {offsets = [0, 65], sizes = [16, 1], strides = [1, 1]} : vector<16x128xf32> to vector<16x1xf32>
    %73 = tpu.transpose %71, [1, 0] : vector<16x1xf32> -> vector<1x16xf32>
    %74 = vector.broadcast %72 : vector<16x1xf32> to vector<16x16xf32>
    %75 = vector.broadcast %73 : vector<1x16xf32> to vector<16x16xf32>
    %76 = arith.addf %74, %75 : vector<16x16xf32>
    %cst_26 = arith.constant 0.000000e+00 : f32
    %77 = vector.broadcast %cst_26 : f32 to vector<16x16xf32>
    %78 = arith.cmpf oge, %76, %77 : vector<16x16xf32>
    %cst_27 = arith.constant 2.000000e-01 : f32
    %79 = vector.broadcast %cst_27 : f32 to vector<16x16xf32>
    %80 = arith.mulf %79, %76 : vector<16x16xf32>
    %81 = arith.select %78, %76, %80 : vector<16x16xi1>, vector<16x16xf32>
    %82 = arith.addf %81, %0 : vector<16x16xf32>
    %cst_28 = arith.constant dense<0xFF800000> : vector<16xf32>
    %83 = vector.multi_reduction <maximumf>, %82, %cst_28 [1] : vector<16x16xf32> to vector<16xf32>
    %84 = vector.shape_cast %83 : vector<16xf32> to vector<16x1xf32>
    %85 = vector.broadcast %84 : vector<16x1xf32> to vector<16x16xf32>
    %86 = arith.subf %82, %85 : vector<16x16xf32>
    %87 = math.exp %86 : vector<16x16xf32>
    %cst_29 = arith.constant dense<0.000000e+00> : vector<16xf32>
    %88 = vector.multi_reduction <add>, %87, %cst_29 [1] : vector<16x16xf32> to vector<16xf32>
    %89 = vector.shape_cast %88 : vector<16xf32> to vector<16x1xf32>
    %90 = tpu.reciprocal %89 {approx = true} : vector<16x1xf32> -> vector<16x1xf32>
    %91 = vector.broadcast %90 : vector<16x1xf32> to vector<16x16xf32>
    %92 = arith.mulf %87, %91 : vector<16x16xf32>
    %cst_30 = arith.constant dense<0.000000e+00> : vector<16x64xf32>
    %93 = tpu.matmul %92, %70, %cst_30 {dimension_numbers = #tpu.dot_dimension_numbers<[1], [0], [0], [1], [0, 0, 1, 1], [], []>} : vector<16x16xf32>, vector<16x64xf32>, vector<16x64xf32> -> vector<16x64xf32>
    %94 = vector.extract_strided_slice %1 {offsets = [2, 0], sizes = [1, 64], strides = [1, 1]} : vector<4x128xf32> to vector<1x64xf32>
    %95 = vector.broadcast %94 : vector<1x64xf32> to vector<16x64xf32>
    %96 = arith.addf %93, %95 : vector<16x64xf32>
    %cst_31 = arith.constant dense<0.000000e+00> : vector<64xf32>
    %97 = vector.multi_reduction <add>, %96, %cst_31 [0] : vector<16x64xf32> to vector<64xf32>
    %98 = vector.shape_cast %97 : vector<64xf32> to vector<1x64xf32>
    %cst_32 = arith.constant 1.600000e+01 : f32
    %99 = vector.broadcast %cst_32 : f32 to vector<1x64xf32>
    %100 = arith.divf %98, %99 : vector<1x64xf32>
    %c3 = arith.constant 3 : index
    %c0_33 = arith.constant 0 : index
    %c0_34 = arith.constant 0 : index
    %101 = vector.load %arg2[%c3, %c0_33, %c0_34] : memref<4x64x128xf32, #tpu.memory_space<vmem>>, vector<1x64x128xf32>
    %102 = vector.shape_cast %101 : vector<1x64x128xf32> to vector<64x128xf32>
    %cst_35 = arith.constant dense<0.000000e+00> : vector<1x128xf32>
    %103 = tpu.matmul %100, %102, %cst_35 {dimension_numbers = #tpu.dot_dimension_numbers<[1], [0], [0], [1], [0, 0, 1, 1], [], []>} : vector<1x64xf32>, vector<64x128xf32>, vector<1x128xf32> -> vector<1x128xf32>
    %104 = vector.extract_strided_slice %1 {offsets = [3, 0], sizes = [1, 128], strides = [1, 1]} : vector<4x128xf32> to vector<1x128xf32>
    %105 = arith.addf %103, %104 : vector<1x128xf32>
    %c0_36 = arith.constant 0 : index
    %c0_37 = arith.constant 0 : index
    %106 = vector.load %arg4[%c0_36, %c0_37] : memref<1x128xf32, #tpu.memory_space<vmem>>, vector<1x128xf32>
    tpu.vector_store %arg4[%c0_36, %c0_37], %105 {strides = array<i32>} : memref<1x128xf32, #tpu.memory_space<vmem>>, vector<1x128xf32>,
    return
  }
}

</mosaic_0001>

<llo_original>
// kernel: gcn_forward.1
$region0: #{gcn_forward.1}
  #allocation0 [shape = 'u32[]', space=smem, size = 0x4, offset = 0x4, fixed_abs, tag = 'smem constant byte address 0x4 - core index']
  #allocation1 [shape = 'u32[144,128]{1,0:T(1,128)}', space=vmem, size = 0x12000, scoped, tag = 'internal scratch']
  %s0 = inlined_call_operand.vmem [shape: f32[16,64], index: 0, kind: input, shape index: {}]
  %s1 = inlined_call_operand.vmem [shape: f32[16,16], index: 1, kind: input, shape index: {}]
  %s2 = inlined_call_operand.hbm [shape: f32[4,64,128], index: 2, kind: input, shape index: {}]
  %s3 = inlined_call_operand.vmem [shape: f32[4,128], index: 3, kind: input, shape index: {}]
  %s4 = inlined_call_operand.hbm [shape: f32[1,128], index: 4, kind: output, shape index: {}]
  %s5 = sld [smem:[#allocation0]]
  $region30: #{gcn_forward.1} parent=0
    _
  %s7 = ssub.s32 1, %s5
  %s8 = scalar_select 0, %s7, %s5
  $region1: #{gcn_forward.1} parent=0
    #allocation2 [shape = 'u8[131072]{0}', space=vmem, size = 0x20000, scoped, tag = 'input window, operand 2, single buffered']
    #allocation3 [shape = 's32[1]{0}', space=sflag, size = 0x4, scoped, tag = 'scoped memory for gcn_forward.1']
    #allocation4 [shape = 's32[1]{0}', space=sflag, size = 0x4, scoped, tag = 'scoped memory for gcn_forward.1']
    #allocation5 [shape = 'u8[512]{0}', space=vmem, size = 0x400, scoped, tag = 'output window, operand 0, single buffered']
    %9 = vsyncpa [#allocation3], 0
    %10 = vsyncpa [#allocation4], 0
    // Predicated region
    $region2: #{gcn_forward.1} parent=1 // pred_check
      _
    $region3: #{gcn_forward.1} parent=1 // pred_check_branch
      %12 = sbr.rel (0) target = $region5
    $region4: #{gcn_forward.1} parent=1 // pred_region
      _
    $region5: #{gcn_forward.1} parent=1 // pred_fallthru
      _
    // Predicated region
    $region6: #{gcn_forward.1} parent=1 // pred_check
      _
    $region7: #{gcn_forward.1} parent=1 // pred_check_branch
      %14 = sbr.rel (0) target = $region9
    $region8: #{gcn_forward.1} parent=1 // pred_region
      _
    $region9: #{gcn_forward.1} parent=1 // pred_fallthru
      _
    // Predicated region
    $region10: #{gcn_forward.1} parent=1 // pred_check
      _
    $region11: #{gcn_forward.1} parent=1 // pred_check_branch
      %16 = sbr.rel (0) target = $region13
    $region12: #{gcn_forward.1} parent=1 // pred_region
      %s18 = ssub.s32 4096, 4096
      %19 = vsyncadd [#allocation3], %s18
      %s20 = sshll.u32 [#allocation2], 4
      %s21 = int_to_ptr.vmem [resolvable:$true] %s20
      %26 = dma.hbm_to_vmem [thread:$0]  %s2, 4096, %s21, [#allocation3], 128, 128, 8
    $region13: #{gcn_forward.1} parent=1 // pred_fallthru
      _
    // Predicated region
    $region14: #{gcn_forward.1} parent=1 // pred_check
      _
    $region15: #{gcn_forward.1} parent=1 // pred_check_branch
      %28 = sbr.rel (0) target = $region17
    $region16: #{gcn_forward.1} parent=1 // pred_region
      _
    $region17: #{gcn_forward.1} parent=1 // pred_fallthru
      _
    // Predicated region
    $region18: #{gcn_forward.1} parent=1 // pred_check
      _
    $region19: #{gcn_forward.1} parent=1 // pred_check_branch
      %30 = sbr.rel (0) target = $region21
    $region20: #{gcn_forward.1} parent=1 // pred_region
      %31 = dma.done [#allocation3], 4096
    $region21: #{gcn_forward.1} parent=1 // pred_fallthru
      _
    %v32 = vld [vmem:[%s1] sm:$0xff]
    %v33 = vld [vmem:[%s1 + $0x8] sm:$0xff]
    %v34 = vld [vmem:[%s3] sm:$0xf]
    %v35 = vld [vmem:[%s0] sm:$0xff]
    %v36 = vld [vmem:[%s0 + $0x8] sm:$0xff]
    %v37 = vld [vmem:[#allocation2] sm:$0xff]
    %v38 = vld [vmem:[#allocation2 + $0x8] sm:$0xff]
    %v39 = vld [vmem:[#allocation2 + $0x10] sm:$0xff]
    %v40 = vld [vmem:[#allocation2 + $0x18] sm:$0xff]
    %v41 = vld [vmem:[#allocation2 + $0x20] sm:$0xff]
    %v42 = vld [vmem:[#allocation2 + $0x28] sm:$0xff]
    %v43 = vld [vmem:[#allocation2 + $0x30] sm:$0xff]
    %v44 = vld [vmem:[#allocation2 + $0x38] sm:$0xff]
    %vm45 = vcmask 523264
    %v47 = vsel %vm45, %v35, 0
    %v50 = vsel %vm45, %v36, 0
    %52 = vmatprep.subr.mxu0 0.0
    %53 = vmatpush1.msra.mxu0 %v37
    %54 = vmatprep.subr.mxu0 0.0
    %55 = vmatpush1.msra.mxu0 %v38
    %56 = vmatprep.subr.mxu0 0.0
    %57 = vmatpush1.msra.mxu0 %v39
    %58 = vmatprep.subr.mxu0 0.0
    %59 = vmatpush1.msra.mxu0 %v40
    %60 = vmatprep.subr.mxu0 0.0
    %61 = vmatpush1.msra.mxu0 %v41
    %62 = vmatprep.subr.mxu0 0.0
    %63 = vmatpush1.msra.mxu0 %v42
    %64 = vmatprep.subr.mxu0 0.0
    %65 = vmatpush1.msra.mxu0 %v43
    %66 = vmatprep.subr.mxu0 0.0
    %67 = vmatpush1.msra.mxu0 %v44
    %68 = vmatprep.subr.mxu0 0.0
    %69 = vmatpush1.msra.mxu0 0.0
    %70 = vmatprep.subr.mxu0 0.0
    %71 = vmatpush1.msra.mxu0 0.0
    %72 = vmatprep.subr.mxu0 0.0
    %73 = vmatpush1.msra.mxu0 0.0
    %74 = vmatprep.subr.mxu0 0.0
    %75 = vmatpush1.msra.mxu0 0.0
    %76 = vmatprep.subr.mxu0 0.0
    %77 = vmatpush1.msra.mxu0 0.0
    %78 = vmatprep.subr.mxu0 0.0
    %79 = vmatpush1.msra.mxu0 0.0
    %80 = vmatprep.subr.mxu0 0.0
    %81 = vmatpush1.msra.mxu0 0.0
    %82 = vmatprep.subr.mxu0 0.0
    %83 = vmatpush1.msra.mxu0 0.0
    %84 = vmatprep.subr.mxu0 0.0
    %85 = vmatpush1.msra.mxu0 0.0
    %86 = vmatprep.subr.mxu0 0.0
    %87 = vmatpush1.msra.mxu0 0.0
    %88 = vmatprep.subr.mxu0 0.0
    %89 = vmatpush1.msra.mxu0 0.0
    %90 = vmatprep.subr.mxu0 0.0
    %91 = vmatpush1.msra.mxu0 0.0
    %92 = vmatprep.subr.mxu0 0.0
    %93 = vmatpush1.msra.mxu0 0.0
    %94 = vmatprep.subr.mxu0 0.0
    %95 = vmatpush1.msra.mxu0 0.0
    %96 = vmatprep.subr.mxu0 0.0
    %97 = vmatpush1.msra.mxu0 0.0
    %98 = vmatprep.subr.mxu0 0.0
    %99 = vmatpush1.msra.mxu0 0.0
    %100 = vmatprep.subr.mxu0 0.0
    %101 = vmatpush1.msra.mxu0 0.0
    %102 = vmatprep.subr.mxu0 0.0
    %103 = vmatpush1.msra.mxu0 0.0
    %104 = vmatprep.subr.mxu0 0.0
    %105 = vmatpush1.msra.mxu0 0.0
    %106 = vmatprep.subr.mxu0 0.0
    %107 = vmatpush1.msra.mxu0 0.0
    %108 = vmatprep.subr.mxu0 0.0
    %109 = vmatpush1.msra.mxu0 0.0
    %110 = vmatprep.subr.mxu0 0.0
    %111 = vmatpush1.msra.mxu0 0.0
    %112 = vmatprep.subr.mxu0 0.0
    %113 = vmatpush1.msra.mxu0 0.0
    %114 = vmatprep.subr.mxu0 0.0
    %115 = vmatpush1.msra.mxu0 0.0
    %116 = vmatprep.mubr.f32.mxu0 0.0
    %117 = vmatmul.mubr.f32.gmra.mrb[0].mxu0 %v47
    %v118 = vpop.f32.mrb[0].mxu0
    %v119 = vadd.f32 0.0, %v118
    %v120 = vpop.f32.mrb[0].mxu0
    %121 = vmatprep.mubr.f32.mxu0 0.0
    %122 = vmatmul.mubr.f32.gmra.mrb[0].mxu0 %v50
    %v123 = vpop.f32.mrb[0].mxu0
    %v124 = vadd.f32 0.0, %v123
    %v125 = vpop.f32.mrb[0].mxu0
    %126 = vdwg.mxu0
    %129 = vrot.lane.b32.xlu0 %v119, 64
    %v130 = vpop.permute.xlu0 %129
    %131 = vrot.lane.b32.xlu0 %v124, 64
    %v132 = vpop.permute.xlu0 %131
    %135 = vxpose.xlu0.b32.start [1/16] %v130, 128
    %136 = vxpose.xlu0.b32.cont [2/16] %v132, 128
    %137 = vxpose.xlu0.b32.cont [3/16] 0.0, 128
    %138 = vxpose.xlu0.b32.cont [4/16] 0.0, 128
    %139 = vxpose.xlu0.b32.cont [5/16] 0.0, 128
    %140 = vxpose.xlu0.b32.cont [6/16] 0.0, 128
    %141 = vxpose.xlu0.b32.cont [7/16] 0.0, 128
    %142 = vxpose.xlu0.b32.cont [8/16] 0.0, 128
    %143 = vxpose.xlu0.b32.cont [9/16] 0.0, 128
    %144 = vxpose.xlu0.b32.cont [10/16] 0.0, 128
    %145 = vxpose.xlu0.b32.cont [11/16] 0.0, 128
    %146 = vxpose.xlu0.b32.cont [12/16] 0.0, 128
    %147 = vxpose.xlu0.b32.cont [13/16] 0.0, 128
    %148 = vxpose.xlu0.b32.cont [14/16] 0.0, 128
    %149 = vxpose.xlu0.b32.cont [15/16] 0.0, 128
    %150 = vxpose.xlu0.b32.end [16/16] 0.0, 128
    %v151 = vpop.trf.xlu0
    %v152 = vpop.trf.xlu0
    %v153 = vpop.trf.xlu0
    %v154 = vpop.trf.xlu0
    %v155 = vpop.trf.xlu0
    %v156 = vpop.trf.xlu0
    %v157 = vpop.trf.xlu0
    %v158 = vpop.trf.xlu0
    %v159 = vpop.trf.xlu0
    %v160 = vpop.trf.xlu0
    %v161 = vpop.trf.xlu0
    %v162 = vpop.trf.xlu0
    %v163 = vpop.trf.xlu0
    %v164 = vpop.trf.xlu0
    %v165 = vpop.trf.xlu0
    %v166 = vpop.trf.xlu0
    %167 = vset.pattern.permute.xlu0 65
    %168 = vperm.xlu0 %167, %v119
    %v169 = vpop.permute.xlu0 %168
    %171 = vset.pattern.permute.xlu0 65
    %172 = vperm.xlu0 %171, %v124
    %v173 = vpop.permute.xlu0 %172
    %v175 = vlaneseq
    %v176 = vshrl.u32 %v175, 7
    %v177 = vsub.s32 0, %v176
    %v178 = vrot.slane %v151, %v177
    %v179 = vadd.f32 %v169, %v178
    %v180 = vadd.f32 %v173, %v178
    %vm181 = vcmp.ge.f32.partialorder %v179, 0.0
    %vm182 = vcmp.ge.f32.partialorder %v180, 0.0
    %v183 = vmul.f32 %v179, 0.2
    %v184 = vmul.f32 %v180, 0.2
    %v185 = vsel %vm181, %v179, %v183
    %v186 = vsel %vm182, %v180, %v184
    %v187 = vadd.f32 %v185, %v32
    %v188 = vadd.f32 %v186, %v33
    %vm189 = vcmask 130048
    %v190 = vsel %vm189, %v187, -inf
    %191 = vmax.xlane.f32.xlu0 %v190
    %v192 = vpop.xlane.xlu0 %191
    %v193 = vsel %vm189, %v188, -inf
    %194 = vmax.xlane.f32.xlu0 %v193
    %v195 = vpop.xlane.xlu0 %194
    %v196 = vsub.f32 %v187, %v192
    %v197 = vsub.f32 %v188, %v195
    %v198 = vmul.f32 %v196, 1.442695
    %v199 = vpow.pop %v198
    %v200 = vmul.f32 %v197, 1.442695
    %v201 = vpow.pop %v200
    %v202 = vsel %vm189, %v199, 0.0
    %203 = vadd.xlane.f32.xlu0 %v202
    %v204 = vpop.xlane.xlu0 %203
    %v205 = vsel %vm189, %v201, 0.0
    %206 = vadd.xlane.f32.xlu0 %v205
    %v207 = vpop.xlane.xlu0 %206
    %v208 = vrcp.pop %v204
    %v209 = vrcp.pop %v207
    %v210 = vmul.f32 %v199, %v208
    %v211 = vmul.f32 %v201, %v209
    %v212 = vlaneseq
    %v213 = vshrl.u32 %v212, 7
    %v214 = vsub.s32 0, %v213
    %v215 = vrot.slane %v34, %v214
    %v217 = vsel %vm189, %v210, 0
    %v220 = vsel %vm189, %v211, 0
    %222 = vmatprep.subr.mxu0 0.0
    %223 = vmatpush1.msra.mxu0 %v119
    %224 = vmatprep.subr.mxu0 0.0
    %225 = vmatpush1.msra.mxu0 %v124
    %226 = vmatprep.subr.mxu0 0.0
    %227 = vmatpush1.msra.mxu0 0.0
    %228 = vmatprep.subr.mxu0 0.0
    %229 = vmatpush1.msra.mxu0 0.0
    %230 = vmatprep.subr.mxu0 0.0
    %231 = vmatpush1.msra.mxu0 0.0
    %232 = vmatprep.subr.mxu0 0.0
    %233 = vmatpush1.msra.mxu0 0.0
    %234 = vmatprep.subr.mxu0 0.0
    %235 = vmatpush1.msra.mxu0 0.0
    %236 = vmatprep.subr.mxu0 0.0
    %237 = vmatpush1.msra.mxu0 0.0
    %238 = vmatprep.subr.mxu0 0.0
    %239 = vmatpush1.msra.mxu0 0.0
    %240 = vmatprep.subr.mxu0 0.0
    %241 = vmatpush1.msra.mxu0 0.0
    %242 = vmatprep.subr.mxu0 0.0
    %243 = vmatpush1.msra.mxu0 0.0
    %244 = vmatprep.subr.mxu0 0.0
    %245 = vmatpush1.msra.mxu0 0.0
    %246 = vmatprep.subr.mxu0 0.0
    %247 = vmatpush1.msra.mxu0 0.0
    %248 = vmatprep.subr.mxu0 0.0
    %249 = vmatpush1.msra.mxu0 0.0
    %250 = vmatprep.subr.mxu0 0.0
    %251 = vmatpush1.msra.mxu0 0.0
    %252 = vmatprep.subr.mxu0 0.0
    %253 = vmatpush1.msra.mxu0 0.0
    %254 = vmatprep.subr.mxu0 0.0
    %255 = vmatpush1.msra.mxu0 0.0
    %256 = vmatprep.subr.mxu0 0.0
    %257 = vmatpush1.msra.mxu0 0.0
    %258 = vmatprep.subr.mxu0 0.0
    %259 = vmatpush1.msra.mxu0 0.0
    %260 = vmatprep.subr.mxu0 0.0
    %261 = vmatpush1.msra.mxu0 0.0
    %262 = vmatprep.subr.mxu0 0.0
    %263 = vmatpush1.msra.mxu0 0.0
    %264 = vmatprep.subr.mxu0 0.0
    %265 = vmatpush1.msra.mxu0 0.0
    %266 = vmatprep.subr.mxu0 0.0
    %267 = vmatpush1.msra.mxu0 0.0
    %268 = vmatprep.subr.mxu0 0.0
    %269 = vmatpush1.msra.mxu0 0.0
    %270 = vmatprep.subr.mxu0 0.0
    %271 = vmatpush1.msra.mxu0 0.0
    %272 = vmatprep.subr.mxu0 0.0
    %273 = vmatpush1.msra.mxu0 0.0
    %274 = vmatprep.subr.mxu0 0.0
    %275 = vmatpush1.msra.mxu0 0.0
    %276 = vmatprep.subr.mxu0 0.0
    %277 = vmatpush1.msra.mxu0 0.0
    %278 = vmatprep.subr.mxu0 0.0
    %279 = vmatpush1.msra.mxu0 0.0
    %280 = vmatprep.subr.mxu0 0.0
    %281 = vmatpush1.msra.mxu0 0.0
    %282 = vmatprep.subr.mxu0 0.0
    %283 = vmatpush1.msra.mxu0 0.0
    %284 = vmatprep.subr.mxu0 0.0
    %285 = vmatpush1.msra.mxu0 0.0
    %286 = vmatprep.mubr.f32.mxu0 0.0
    %287 = vmatmul.mubr.f32.gmra.mrb[0].mxu0 %v217
    %v288 = vpop.f32.mrb[0].mxu0
    %v289 = vadd.f32 %v215, %v288
    %v290 = vpop.f32.mrb[0].mxu0
    %291 = vmatprep.mubr.f32.mxu0 0.0
    %292 = vmatmul.mubr.f32.gmra.mrb[0].mxu0 %v220
    %v293 = vpop.f32.mrb[0].mxu0
    %v294 = vadd.f32 %v215, %v293
    %v295 = vpop.f32.mrb[0].mxu0
    %296 = vdwg.mxu0
    %v297 = vmax.f32 %v289, 0.0
    %v298 = vmax.f32 %v294, 0.0
    %s299 = scalar_lea.vmem [#allocation2], 64
    %v300 = vld [vmem:[%s299] sm:$0xff]
    %v301 = vld [vmem:[%s299 + $0x8] sm:$0xff]
    %v302 = vld [vmem:[%s299 + $0x10] sm:$0xff]
    %v303 = vld [vmem:[%s299 + $0x18] sm:$0xff]
    %v304 = vld [vmem:[%s299 + $0x20] sm:$0xff]
    %v305 = vld [vmem:[%s299 + $0x28] sm:$0xff]
    %v306 = vld [vmem:[%s299 + $0x30] sm:$0xff]
    %v307 = vld [vmem:[%s299 + $0x38] sm:$0xff]
    %v309 = vsel %vm45, %v297, 0
    %v312 = vsel %vm45, %v298, 0
    %314 = vmatprep.subr.mxu0 0.0
    %315 = vmatpush1.msra.mxu0 %v300
    %316 = vmatprep.subr.mxu0 0.0
    %317 = vmatpush1.msra.mxu0 %v301
    %318 = vmatprep.subr.mxu0 0.0
    %319 = vmatpush1.msra.mxu0 %v302
    %320 = vmatprep.subr.mxu0 0.0
    %321 = vmatpush1.msra.mxu0 %v303
    %322 = vmatprep.subr.mxu0 0.0
    %323 = vmatpush1.msra.mxu0 %v304
    %324 = vmatprep.subr.mxu0 0.0
    %325 = vmatpush1.msra.mxu0 %v305
    %326 = vmatprep.subr.mxu0 0.0
    %327 = vmatpush1.msra.mxu0 %v306
    %328 = vmatprep.subr.mxu0 0.0
    %329 = vmatpush1.msra.mxu0 %v307
    %330 = vmatprep.subr.mxu0 0.0
    %331 = vmatpush1.msra.mxu0 0.0
    %332 = vmatprep.subr.mxu0 0.0
    %333 = vmatpush1.msra.mxu0 0.0
    %334 = vmatprep.subr.mxu0 0.0
    %335 = vmatpush1.msra.mxu0 0.0
    %336 = vmatprep.subr.mxu0 0.0
    %337 = vmatpush1.msra.mxu0 0.0
    %338 = vmatprep.subr.mxu0 0.0
    %339 = vmatpush1.msra.mxu0 0.0
    %340 = vmatprep.subr.mxu0 0.0
    %341 = vmatpush1.msra.mxu0 0.0
    %342 = vmatprep.subr.mxu0 0.0
    %343 = vmatpush1.msra.mxu0 0.0
    %344 = vmatprep.subr.mxu0 0.0
    %345 = vmatpush1.msra.mxu0 0.0
    %346 = vmatprep.subr.mxu0 0.0
    %347 = vmatpush1.msra.mxu0 0.0
    %348 = vmatprep.subr.mxu0 0.0
    %349 = vmatpush1.msra.mxu0 0.0
    %350 = vmatprep.subr.mxu0 0.0
    %351 = vmatpush1.msra.mxu0 0.0
    %352 = vmatprep.subr.mxu0 0.0
    %353 = vmatpush1.msra.mxu0 0.0
    %354 = vmatprep.subr.mxu0 0.0
    %355 = vmatpush1.msra.mxu0 0.0
    %356 = vmatprep.subr.mxu0 0.0
    %357 = vmatpush1.msra.mxu0 0.0
    %358 = vmatprep.subr.mxu0 0.0
    %359 = vmatpush1.msra.mxu0 0.0
    %360 = vmatprep.subr.mxu0 0.0
    %361 = vmatpush1.msra.mxu0 0.0
    %362 = vmatprep.subr.mxu0 0.0
    %363 = vmatpush1.msra.mxu0 0.0
    %364 = vmatprep.subr.mxu0 0.0
    %365 = vmatpush1.msra.mxu0 0.0
    %366 = vmatprep.subr.mxu0 0.0
    %367 = vmatpush1.msra.mxu0 0.0
    %368 = vmatprep.subr.mxu0 0.0
    %369 = vmatpush1.msra.mxu0 0.0
    %370 = vmatprep.subr.mxu0 0.0
    %371 = vmatpush1.msra.mxu0 0.0
    %372 = vmatprep.subr.mxu0 0.0
    %373 = vmatpush1.msra.mxu0 0.0
    %374 = vmatprep.subr.mxu0 0.0
    %375 = vmatpush1.msra.mxu0 0.0
    %376 = vmatprep.subr.mxu0 0.0
    %377 = vmatpush1.msra.mxu0 0.0
    %378 = vmatprep.mubr.f32.mxu0 0.0
    %379 = vmatmul.mubr.f32.gmra.mrb[0].mxu0 %v309
    %v380 = vpop.f32.mrb[0].mxu0
    %v381 = vadd.f32 0.0, %v380
    %v382 = vpop.f32.mrb[0].mxu0
    %383 = vmatprep.mubr.f32.mxu0 0.0
    %384 = vmatmul.mubr.f32.gmra.mrb[0].mxu0 %v312
    %v385 = vpop.f32.mrb[0].mxu0
    %v386 = vadd.f32 0.0, %v385
    %v387 = vpop.f32.mrb[0].mxu0
    %388 = vdwg.mxu0
    %391 = vrot.lane.b32.xlu0 %v381, 64
    %v392 = vpop.permute.xlu0 %391
    %393 = vrot.lane.b32.xlu0 %v386, 64
    %v394 = vpop.permute.xlu0 %393
    %397 = vxpose.xlu0.b32.start [1/16] %v392, 128
    %398 = vxpose.xlu0.b32.cont [2/16] %v394, 128
    %399 = vxpose.xlu0.b32.cont [3/16] 0.0, 128
    %400 = vxpose.xlu0.b32.cont [4/16] 0.0, 128
    %401 = vxpose.xlu0.b32.cont [5/16] 0.0, 128
    %402 = vxpose.xlu0.b32.cont [6/16] 0.0, 128
    %403 = vxpose.xlu0.b32.cont [7/16] 0.0, 128
    %404 = vxpose.xlu0.b32.cont [8/16] 0.0, 128
    %405 = vxpose.xlu0.b32.cont [9/16] 0.0, 128
    %406 = vxpose.xlu0.b32.cont [10/16] 0.0, 128
    %407 = vxpose.xlu0.b32.cont [11/16] 0.0, 128
    %408 = vxpose.xlu0.b32.cont [12/16] 0.0, 128
    %409 = vxpose.xlu0.b32.cont [13/16] 0.0, 128
    %410 = vxpose.xlu0.b32.cont [14/16] 0.0, 128
    %411 = vxpose.xlu0.b32.cont [15/16] 0.0, 128
    %412 = vxpose.xlu0.b32.end [16/16] 0.0, 128
    %v413 = vpop.trf.xlu0
    %v414 = vpop.trf.xlu0
    %v415 = vpop.trf.xlu0
    %v416 = vpop.trf.xlu0
    %v417 = vpop.trf.xlu0
    %v418 = vpop.trf.xlu0
    %v419 = vpop.trf.xlu0
    %v420 = vpop.trf.xlu0
    %v421 = vpop.trf.xlu0
    %v422 = vpop.trf.xlu0
    %v423 = vpop.trf.xlu0
    %v424 = vpop.trf.xlu0
    %v425 = vpop.trf.xlu0
    %v426 = vpop.trf.xlu0
    %v427 = vpop.trf.xlu0
    %v428 = vpop.trf.xlu0
    %429 = vset.pattern.permute.xlu0 65
    %430 = vperm.xlu0 %429, %v381
    %v431 = vpop.permute.xlu0 %430
    %433 = vset.pattern.permute.xlu0 65
    %434 = vperm.xlu0 %433, %v386
    %v435 = vpop.permute.xlu0 %434
    %v437 = vlaneseq
    %v438 = vshrl.u32 %v437, 7
    %v439 = vsub.s32 0, %v438
    %v440 = vrot.slane %v413, %v439
    %v441 = vadd.f32 %v431, %v440
    %v442 = vadd.f32 %v435, %v440
    %vm443 = vcmp.ge.f32.partialorder %v441, 0.0
    %vm444 = vcmp.ge.f32.partialorder %v442, 0.0
    %v445 = vmul.f32 %v441, 0.2
    %v446 = vmul.f32 %v442, 0.2
    %v447 = vsel %vm443, %v441, %v445
    %v448 = vsel %vm444, %v442, %v446
    %v449 = vadd.f32 %v447, %v32
    %v450 = vadd.f32 %v448, %v33
    %v451 = vsel %vm189, %v449, -inf
    %452 = vmax.xlane.f32.xlu0 %v451
    %v453 = vpop.xlane.xlu0 %452
    %v454 = vsel %vm189, %v450, -inf
    %455 = vmax.xlane.f32.xlu0 %v454
    %v456 = vpop.xlane.xlu0 %455
    %v457 = vsub.f32 %v449, %v453
    %v458 = vsub.f32 %v450, %v456
    %v459 = vmul.f32 %v457, 1.442695
    %v460 = vpow.pop %v459
    %v461 = vmul.f32 %v458, 1.442695
    %v462 = vpow.pop %v461
    %v463 = vsel %vm189, %v460, 0.0
    %464 = vadd.xlane.f32.xlu0 %v463
    %v465 = vpop.xlane.xlu0 %464
    %v466 = vsel %vm189, %v462, 0.0
    %467 = vadd.xlane.f32.xlu0 %v466
    %v468 = vpop.xlane.xlu0 %467
    %v469 = vrcp.pop %v465
    %v470 = vrcp.pop %v468
    %v471 = vmul.f32 %v460, %v469
    %v472 = vmul.f32 %v462, %v470
    %v473 = vlaneseq
    %v474 = vshrl.u32 %v473, 7
    %v475 = vsub.s32 1, %v474
    %v476 = vrot.slane %v34, %v475
    %v478 = vsel %vm189, %v471, 0
    %v481 = vsel %vm189, %v472, 0
    %483 = vmatprep.subr.mxu0 0.0
    %484 = vmatpush1.msra.mxu0 %v381
    %485 = vmatprep.subr.mxu0 0.0
    %486 = vmatpush1.msra.mxu0 %v386
    %487 = vmatprep.subr.mxu0 0.0
    %488 = vmatpush1.msra.mxu0 0.0
    %489 = vmatprep.subr.mxu0 0.0
    %490 = vmatpush1.msra.mxu0 0.0
    %491 = vmatprep.subr.mxu0 0.0
    %492 = vmatpush1.msra.mxu0 0.0
    %493 = vmatprep.subr.mxu0 0.0
    %494 = vmatpush1.msra.mxu0 0.0
    %495 = vmatprep.subr.mxu0 0.0
    %496 = vmatpush1.msra.mxu0 0.0
    %497 = vmatprep.subr.mxu0 0.0
    %498 = vmatpush1.msra.mxu0 0.0
    %499 = vmatprep.subr.mxu0 0.0
    %500 = vmatpush1.msra.mxu0 0.0
    %501 = vmatprep.subr.mxu0 0.0
    %502 = vmatpush1.msra.mxu0 0.0
    %503 = vmatprep.subr.mxu0 0.0
    %504 = vmatpush1.msra.mxu0 0.0
    %505 = vmatprep.subr.mxu0 0.0
    %506 = vmatpush1.msra.mxu0 0.0
    %507 = vmatprep.subr.mxu0 0.0
    %508 = vmatpush1.msra.mxu0 0.0
    %509 = vmatprep.subr.mxu0 0.0
    %510 = vmatpush1.msra.mxu0 0.0
    %511 = vmatprep.subr.mxu0 0.0
    %512 = vmatpush1.msra.mxu0 0.0
    %513 = vmatprep.subr.mxu0 0.0
    %514 = vmatpush1.msra.mxu0 0.0
    %515 = vmatprep.subr.mxu0 0.0
    %516 = vmatpush1.msra.mxu0 0.0
    %517 = vmatprep.subr.mxu0 0.0
    %518 = vmatpush1.msra.mxu0 0.0
    %519 = vmatprep.subr.mxu0 0.0
    %520 = vmatpush1.msra.mxu0 0.0
    %521 = vmatprep.subr.mxu0 0.0
    %522 = vmatpush1.msra.mxu0 0.0
    %523 = vmatprep.subr.mxu0 0.0
    %524 = vmatpush1.msra.mxu0 0.0
    %525 = vmatprep.subr.mxu0 0.0
    %526 = vmatpush1.msra.mxu0 0.0
    %527 = vmatprep.subr.mxu0 0.0
    %528 = vmatpush1.msra.mxu0 0.0
    %529 = vmatprep.subr.mxu0 0.0
    %530 = vmatpush1.msra.mxu0 0.0
    %531 = vmatprep.subr.mxu0 0.0
    %532 = vmatpush1.msra.mxu0 0.0
    %533 = vmatprep.subr.mxu0 0.0
    %534 = vmatpush1.msra.mxu0 0.0
    %535 = vmatprep.subr.mxu0 0.0
    %536 = vmatpush1.msra.mxu0 0.0
    %537 = vmatprep.subr.mxu0 0.0
    %538 = vmatpush1.msra.mxu0 0.0
    %539 = vmatprep.subr.mxu0 0.0
    %540 = vmatpush1.msra.mxu0 0.0
    %541 = vmatprep.subr.mxu0 0.0
    %542 = vmatpush1.msra.mxu0 0.0
    %543 = vmatprep.subr.mxu0 0.0
    %544 = vmatpush1.msra.mxu0 0.0
    %545 = vmatprep.subr.mxu0 0.0
    %546 = vmatpush1.msra.mxu0 0.0
    %547 = vmatprep.mubr.f32.mxu0 0.0
    %548 = vmatmul.mubr.f32.gmra.mrb[0].mxu0 %v478
    %v549 = vpop.f32.mrb[0].mxu0
    %v550 = vadd.f32 %v476, %v549
    %v551 = vpop.f32.mrb[0].mxu0
    %552 = vmatprep.mubr.f32.mxu0 0.0
    %553 = vmatmul.mubr.f32.gmra.mrb[0].mxu0 %v481
    %v554 = vpop.f32.mrb[0].mxu0
    %v555 = vadd.f32 %v476, %v554
    %v556 = vpop.f32.mrb[0].mxu0
    %557 = vdwg.mxu0
    %v558 = vmax.f32 %v550, 0.0
    %v559 = vmax.f32 %v555, 0.0
    %s560 = scalar_lea.vmem [#allocation2], 128
    %v561 = vld [vmem:[%s560] sm:$0xff]
    %v562 = vld [vmem:[%s560 + $0x8] sm:$0xff]
    %v563 = vld [vmem:[%s560 + $0x10] sm:$0xff]
    %v564 = vld [vmem:[%s560 + $0x18] sm:$0xff]
    %v565 = vld [vmem:[%s560 + $0x20] sm:$0xff]
    %v566 = vld [vmem:[%s560 + $0x28] sm:$0xff]
    %v567 = vld [vmem:[%s560 + $0x30] sm:$0xff]
    %v568 = vld [vmem:[%s560 + $0x38] sm:$0xff]
    %v570 = vsel %vm45, %v558, 0
    %v573 = vsel %vm45, %v559, 0
    %575 = vmatprep.subr.mxu0 0.0
    %576 = vmatpush1.msra.mxu0 %v561
    %577 = vmatprep.subr.mxu0 0.0
    %578 = vmatpush1.msra.mxu0 %v562
    %579 = vmatprep.subr.mxu0 0.0
    %580 = vmatpush1.msra.mxu0 %v563
    %581 = vmatprep.subr.mxu0 0.0
    %582 = vmatpush1.msra.mxu0 %v564
    %583 = vmatprep.subr.mxu0 0.0
    %584 = vmatpush1.msra.mxu0 %v565
    %585 = vmatprep.subr.mxu0 0.0
    %586 = vmatpush1.msra.mxu0 %v566
    %587 = vmatprep.subr.mxu0 0.0
    %588 = vmatpush1.msra.mxu0 %v567
    %589 = vmatprep.subr.mxu0 0.0
    %590 = vmatpush1.msra.mxu0 %v568
    %591 = vmatprep.subr.mxu0 0.0
    %592 = vmatpush1.msra.mxu0 0.0
    %593 = vmatprep.subr.mxu0 0.0
    %594 = vmatpush1.msra.mxu0 0.0
    %595 = vmatprep.subr.mxu0 0.0
    %596 = vmatpush1.msra.mxu0 0.0
    %597 = vmatprep.subr.mxu0 0.0
    %598 = vmatpush1.msra.mxu0 0.0
    %599 = vmatprep.subr.mxu0 0.0
    %600 = vmatpush1.msra.mxu0 0.0
    %601 = vmatprep.subr.mxu0 0.0
    %602 = vmatpush1.msra.mxu0 0.0
    %603 = vmatprep.subr.mxu0 0.0
    %604 = vmatpush1.msra.mxu0 0.0
    %605 = vmatprep.subr.mxu0 0.0
    %606 = vmatpush1.msra.mxu0 0.0
    %607 = vmatprep.subr.mxu0 0.0
    %608 = vmatpush1.msra.mxu0 0.0
    %609 = vmatprep.subr.mxu0 0.0
    %610 = vmatpush1.msra.mxu0 0.0
    %611 = vmatprep.subr.mxu0 0.0
    %612 = vmatpush1.msra.mxu0 0.0
    %613 = vmatprep.subr.mxu0 0.0
    %614 = vmatpush1.msra.mxu0 0.0
    %615 = vmatprep.subr.mxu0 0.0
    %616 = vmatpush1.msra.mxu0 0.0
    %617 = vmatprep.subr.mxu0 0.0
    %618 = vmatpush1.msra.mxu0 0.0
    %619 = vmatprep.subr.mxu0 0.0
    %620 = vmatpush1.msra.mxu0 0.0
    %621 = vmatprep.subr.mxu0 0.0
    %622 = vmatpush1.msra.mxu0 0.0
    %623 = vmatprep.subr.mxu0 0.0
    %624 = vmatpush1.msra.mxu0 0.0
    %625 = vmatprep.subr.mxu0 0.0
    %626 = vmatpush1.msra.mxu0 0.0
    %627 = vmatprep.subr.mxu0 0.0
    %628 = vmatpush1.msra.mxu0 0.0
    %629 = vmatprep.subr.mxu0 0.0
    %630 = vmatpush1.msra.mxu0 0.0
    %631 = vmatprep.subr.mxu0 0.0
    %632 = vmatpush1.msra.mxu0 0.0
    %633 = vmatprep.subr.mxu0 0.0
    %634 = vmatpush1.msra.mxu0 0.0
    %635 = vmatprep.subr.mxu0 0.0
    %636 = vmatpush1.msra.mxu0 0.0
    %637 = vmatprep.subr.mxu0 0.0
    %638 = vmatpush1.msra.mxu0 0.0
    %639 = vmatprep.mubr.f32.mxu0 0.0
    %640 = vmatmul.mubr.f32.gmra.mrb[0].mxu0 %v570
    %v641 = vpop.f32.mrb[0].mxu0
    %v642 = vadd.f32 0.0, %v641
    %v643 = vpop.f32.mrb[0].mxu0
    %644 = vmatprep.mubr.f32.mxu0 0.0
    %645 = vmatmul.mubr.f32.gmra.mrb[0].mxu0 %v573
    %v646 = vpop.f32.mrb[0].mxu0
    %v647 = vadd.f32 0.0, %v646
    %v648 = vpop.f32.mrb[0].mxu0
    %649 = vdwg.mxu0
    %652 = vrot.lane.b32.xlu0 %v642, 64
    %v653 = vpop.permute.xlu0 %652
    %654 = vrot.lane.b32.xlu0 %v647, 64
    %v655 = vpop.permute.xlu0 %654
    %658 = vxpose.xlu0.b32.start [1/16] %v653, 128
    %659 = vxpose.xlu0.b32.cont [2/16] %v655, 128
    %660 = vxpose.xlu0.b32.cont [3/16] 0.0, 128
    %661 = vxpose.xlu0.b32.cont [4/16] 0.0, 128
    %662 = vxpose.xlu0.b32.cont [5/16] 0.0, 128
    %663 = vxpose.xlu0.b32.cont [6/16] 0.0, 128
    %664 = vxpose.xlu0.b32.cont [7/16] 0.0, 128
    %665 = vxpose.xlu0.b32.cont [8/16] 0.0, 128
    %666 = vxpose.xlu0.b32.cont [9/16] 0.0, 128
    %667 = vxpose.xlu0.b32.cont [10/16] 0.0, 128
    %668 = vxpose.xlu0.b32.cont [11/16] 0.0, 128
    %669 = vxpose.xlu0.b32.cont [12/16] 0.0, 128
    %670 = vxpose.xlu0.b32.cont [13/16] 0.0, 128
    %671 = vxpose.xlu0.b32.cont [14/16] 0.0, 128
    %672 = vxpose.xlu0.b32.cont [15/16] 0.0, 128
    %673 = vxpose.xlu0.b32.end [16/16] 0.0, 128
    %v674 = vpop.trf.xlu0
    %v675 = vpop.trf.xlu0
    %v676 = vpop.trf.xlu0
    %v677 = vpop.trf.xlu0
    %v678 = vpop.trf.xlu0
    %v679 = vpop.trf.xlu0
    %v680 = vpop.trf.xlu0
    %v681 = vpop.trf.xlu0
    %v682 = vpop.trf.xlu0
    %v683 = vpop.trf.xlu0
    %v684 = vpop.trf.xlu0
    %v685 = vpop.trf.xlu0
    %v686 = vpop.trf.xlu0
    %v687 = vpop.trf.xlu0
    %v688 = vpop.trf.xlu0
    %v689 = vpop.trf.xlu0
    %690 = vset.pattern.permute.xlu0 65
    %691 = vperm.xlu0 %690, %v642
    %v692 = vpop.permute.xlu0 %691
    %694 = vset.pattern.permute.xlu0 65
    %695 = vperm.xlu0 %694, %v647
    %v696 = vpop.permute.xlu0 %695
    %v698 = vlaneseq
    %v699 = vshrl.u32 %v698, 7
    %v700 = vsub.s32 0, %v699
    %v701 = vrot.slane %v674, %v700
    %v702 = vadd.f32 %v692, %v701
    %v703 = vadd.f32 %v696, %v701
    %vm704 = vcmp.ge.f32.partialorder %v702, 0.0
    %vm705 = vcmp.ge.f32.partialorder %v703, 0.0
    %v706 = vmul.f32 %v702, 0.2
    %v707 = vmul.f32 %v703, 0.2
    %v708 = vsel %vm704, %v702, %v706
    %v709 = vsel %vm705, %v703, %v707
    %v710 = vadd.f32 %v708, %v32
    %v711 = vadd.f32 %v709, %v33
    %v712 = vsel %vm189, %v710, -inf
    %713 = vmax.xlane.f32.xlu0 %v712
    %v714 = vpop.xlane.xlu0 %713
    %v715 = vsel %vm189, %v711, -inf
    %716 = vmax.xlane.f32.xlu0 %v715
    %v717 = vpop.xlane.xlu0 %716
    %v718 = vsub.f32 %v710, %v714
    %v719 = vsub.f32 %v711, %v717
    %v720 = vmul.f32 %v718, 1.442695
    %v721 = vpow.pop %v720
    %v722 = vmul.f32 %v719, 1.442695
    %v723 = vpow.pop %v722
    %v724 = vsel %vm189, %v721, 0.0
    %725 = vadd.xlane.f32.xlu0 %v724
    %v726 = vpop.xlane.xlu0 %725
    %v727 = vsel %vm189, %v723, 0.0
    %728 = vadd.xlane.f32.xlu0 %v727
    %v729 = vpop.xlane.xlu0 %728
    %v730 = vrcp.pop %v726
    %v731 = vrcp.pop %v729
    %v732 = vmul.f32 %v721, %v730
    %v733 = vmul.f32 %v723, %v731
    %v734 = vlaneseq
    %v735 = vshrl.u32 %v734, 7
    %v736 = vsub.s32 2, %v735
    %v737 = vrot.slane %v34, %v736
    %v739 = vsel %vm189, %v732, 0
    %v742 = vsel %vm189, %v733, 0
    %744 = vmatprep.subr.mxu0 0.0
    %745 = vmatpush1.msra.mxu0 %v642
    %746 = vmatprep.subr.mxu0 0.0
    %747 = vmatpush1.msra.mxu0 %v647
    %748 = vmatprep.subr.mxu0 0.0
    %749 = vmatpush1.msra.mxu0 0.0
    %750 = vmatprep.subr.mxu0 0.0
    %751 = vmatpush1.msra.mxu0 0.0
    %752 = vmatprep.subr.mxu0 0.0
    %753 = vmatpush1.msra.mxu0 0.0
    %754 = vmatprep.subr.mxu0 0.0
    %755 = vmatpush1.msra.mxu0 0.0
    %756 = vmatprep.subr.mxu0 0.0
    %757 = vmatpush1.msra.mxu0 0.0
    %758 = vmatprep.subr.mxu0 0.0
    %759 = vmatpush1.msra.mxu0 0.0
    %760 = vmatprep.subr.mxu0 0.0
    %761 = vmatpush1.msra.mxu0 0.0
    %762 = vmatprep.subr.mxu0 0.0
    %763 = vmatpush1.msra.mxu0 0.0
    %764 = vmatprep.subr.mxu0 0.0
    %765 = vmatpush1.msra.mxu0 0.0
    %766 = vmatprep.subr.mxu0 0.0
    %767 = vmatpush1.msra.mxu0 0.0
    %768 = vmatprep.subr.mxu0 0.0
    %769 = vmatpush1.msra.mxu0 0.0
    %770 = vmatprep.subr.mxu0 0.0
    %771 = vmatpush1.msra.mxu0 0.0
    %772 = vmatprep.subr.mxu0 0.0
    %773 = vmatpush1.msra.mxu0 0.0
    %774 = vmatprep.subr.mxu0 0.0
    %775 = vmatpush1.msra.mxu0 0.0
    %776 = vmatprep.subr.mxu0 0.0
    %777 = vmatpush1.msra.mxu0 0.0
    %778 = vmatprep.subr.mxu0 0.0
    %779 = vmatpush1.msra.mxu0 0.0
    %780 = vmatprep.subr.mxu0 0.0
    %781 = vmatpush1.msra.mxu0 0.0
    %782 = vmatprep.subr.mxu0 0.0
    %783 = vmatpush1.msra.mxu0 0.0
    %784 = vmatprep.subr.mxu0 0.0
    %785 = vmatpush1.msra.mxu0 0.0
    %786 = vmatprep.subr.mxu0 0.0
    %787 = vmatpush1.msra.mxu0 0.0
    %788 = vmatprep.subr.mxu0 0.0
    %789 = vmatpush1.msra.mxu0 0.0
    %790 = vmatprep.subr.mxu0 0.0
    %791 = vmatpush1.msra.mxu0 0.0
    %792 = vmatprep.subr.mxu0 0.0
    %793 = vmatpush1.msra.mxu0 0.0
    %794 = vmatprep.subr.mxu0 0.0
    %795 = vmatpush1.msra.mxu0 0.0
    %796 = vmatprep.subr.mxu0 0.0
    %797 = vmatpush1.msra.mxu0 0.0
    %798 = vmatprep.subr.mxu0 0.0
    %799 = vmatpush1.msra.mxu0 0.0
    %800 = vmatprep.subr.mxu0 0.0
    %801 = vmatpush1.msra.mxu0 0.0
    %802 = vmatprep.subr.mxu0 0.0
    %803 = vmatpush1.msra.mxu0 0.0
    %804 = vmatprep.subr.mxu0 0.0
    %805 = vmatpush1.msra.mxu0 0.0
    %806 = vmatprep.subr.mxu0 0.0
    %807 = vmatpush1.msra.mxu0 0.0
    %808 = vmatprep.mubr.f32.mxu0 0.0
    %809 = vmatmul.mubr.f32.gmra.mrb[0].mxu0 %v739
    %v810 = vpop.f32.mrb[0].mxu0
    %v811 = vadd.f32 %v737, %v810
    %v812 = vpop.f32.mrb[0].mxu0
    %813 = vmatprep.mubr.f32.mxu0 0.0
    %814 = vmatmul.mubr.f32.gmra.mrb[0].mxu0 %v742
    %v815 = vpop.f32.mrb[0].mxu0
    %v816 = vadd.f32 %v737, %v815
    %v817 = vpop.f32.mrb[0].mxu0
    %818 = vdwg.mxu0
    %v819 = vsel %vm45, %v811, 0.0
    %v820 = vsel %vm45, %v816, 0.0
    %v821 = vadd.f32 %v819, %v820
    %v822 = vrot.slane %v821, 4
    %v823 = vadd.f32 %v821, %v822
    %v824 = vrot.slane %v823, 2
    %v825 = vadd.f32 %v823, %v824
    %v826 = vrot.slane %v825, 1
    %v827 = vadd.f32 %v825, %v826
    %v828 = vrcp.pop 16.0
    %v829 = vmul.f32 %v827, %v828
    %s830 = scalar_lea.vmem [#allocation2], 192
    %v831 = vld [vmem:[%s830] sm:$0xff]
    %v832 = vld [vmem:[%s830 + $0x8] sm:$0xff]
    %v833 = vld [vmem:[%s830 + $0x10] sm:$0xff]
    %v834 = vld [vmem:[%s830 + $0x18] sm:$0xff]
    %v835 = vld [vmem:[%s830 + $0x20] sm:$0xff]
    %v836 = vld [vmem:[%s830 + $0x28] sm:$0xff]
    %v837 = vld [vmem:[%s830 + $0x30] sm:$0xff]
    %v838 = vld [vmem:[%s830 + $0x38] sm:$0xff]
    %v840 = vrot.slane %v34, 3
    %v843 = vsel %vm45, %v829, 0
    %845 = vmatprep.subr.mxu0 0.0
    %846 = vmatpush1.msra.mxu0 %v831
    %847 = vmatprep.subr.mxu0 0.0
    %848 = vmatpush1.msra.mxu0 %v832
    %849 = vmatprep.subr.mxu0 0.0
    %850 = vmatpush1.msra.mxu0 %v833
    %851 = vmatprep.subr.mxu0 0.0
    %852 = vmatpush1.msra.mxu0 %v834
    %853 = vmatprep.subr.mxu0 0.0
    %854 = vmatpush1.msra.mxu0 %v835
    %855 = vmatprep.subr.mxu0 0.0
    %856 = vmatpush1.msra.mxu0 %v836
    %857 = vmatprep.subr.mxu0 0.0
    %858 = vmatpush1.msra.mxu0 %v837
    %859 = vmatprep.subr.mxu0 0.0
    %860 = vmatpush1.msra.mxu0 %v838
    %861 = vmatprep.subr.mxu0 0.0
    %862 = vmatpush1.msra.mxu0 0.0
    %863 = vmatprep.subr.mxu0 0.0
    %864 = vmatpush1.msra.mxu0 0.0
    %865 = vmatprep.subr.mxu0 0.0
    %866 = vmatpush1.msra.mxu0 0.0
    %867 = vmatprep.subr.mxu0 0.0
    %868 = vmatpush1.msra.mxu0 0.0
    %869 = vmatprep.subr.mxu0 0.0
    %870 = vmatpush1.msra.mxu0 0.0
    %871 = vmatprep.subr.mxu0 0.0
    %872 = vmatpush1.msra.mxu0 0.0
    %873 = vmatprep.subr.mxu0 0.0
    %874 = vmatpush1.msra.mxu0 0.0
    %875 = vmatprep.subr.mxu0 0.0
    %876 = vmatpush1.msra.mxu0 0.0
    %877 = vmatprep.subr.mxu0 0.0
    %878 = vmatpush1.msra.mxu0 0.0
    %879 = vmatprep.subr.mxu0 0.0
    %880 = vmatpush1.msra.mxu0 0.0
    %881 = vmatprep.subr.mxu0 0.0
    %882 = vmatpush1.msra.mxu0 0.0
    %883 = vmatprep.subr.mxu0 0.0
    %884 = vmatpush1.msra.mxu0 0.0
    %885 = vmatprep.subr.mxu0 0.0
    %886 = vmatpush1.msra.mxu0 0.0
    %887 = vmatprep.subr.mxu0 0.0
    %888 = vmatpush1.msra.mxu0 0.0
    %889 = vmatprep.subr.mxu0 0.0
    %890 = vmatpush1.msra.mxu0 0.0
    %891 = vmatprep.subr.mxu0 0.0
    %892 = vmatpush1.msra.mxu0 0.0
    %893 = vmatprep.subr.mxu0 0.0
    %894 = vmatpush1.msra.mxu0 0.0
    %895 = vmatprep.subr.mxu0 0.0
    %896 = vmatpush1.msra.mxu0 0.0
    %897 = vmatprep.subr.mxu0 0.0
    %898 = vmatpush1.msra.mxu0 0.0
    %899 = vmatprep.subr.mxu0 0.0
    %900 = vmatpush1.msra.mxu0 0.0
    %901 = vmatprep.subr.mxu0 0.0
    %902 = vmatpush1.msra.mxu0 0.0
    %903 = vmatprep.subr.mxu0 0.0
    %904 = vmatpush1.msra.mxu0 0.0
    %905 = vmatprep.subr.mxu0 0.0
    %906 = vmatpush1.msra.mxu0 0.0
    %907 = vmatprep.subr.mxu0 0.0
    %908 = vmatpush1.msra.mxu0 0.0
    %909 = vmatprep.mubr.f32.mxu0 0.0
    %910 = vmatmul.mubr.f32.gmra.mrb[0].mxu0 %v843
    %v911 = vpop.f32.mrb[0].mxu0
    %v912 = vadd.f32 %v840, %v911
    %v913 = vpop.f32.mrb[0].mxu0
    %914 = vdwg.mxu0
    %915 = vst [vmem:[#allocation5] sm:$0x1] %v912
    // Predicated region
    $region22: #{gcn_forward.1} parent=1 // pred_check
      _
    $region23: #{gcn_forward.1} parent=1 // pred_check_branch
      %917 = sbr.rel (0) target = $region25
    $region24: #{gcn_forward.1} parent=1 // pred_region
      %s919 = ssub.s32 16, 16
      %920 = vsyncadd [#allocation4], %s919
      %s922 = sshll.u32 [#allocation5], 4
      %s923 = int_to_ptr.vmem [resolvable:$true] %s922
      %925 = dma.vmem_to_hbm [thread:$0]  %s923, 16, %s4, [#allocation4]
    $region25: #{gcn_forward.1} parent=1 // pred_fallthru
      _
    // Predicated region
    $region26: #{gcn_forward.1} parent=1 // pred_check
      _
    $region27: #{gcn_forward.1} parent=1 // pred_check_branch
      %927 = sbr.rel (0) target = $region29
    $region28: #{gcn_forward.1} parent=1 // pred_region
      %928 = dma.done [#allocation4], 16
    $region29: #{gcn_forward.1} parent=1 // pred_fallthru
      _
    %929 = vsyncpa [#allocation3], 1
    %930 = vsyncpa [#allocation4], 1

</llo_original>
